<compile_context>
chip_gen: v7x
topology: tpu7x:2x2x1
jax: 0.10.0
libtpu: 0.0.40
codegen_flags: <defaults>
</compile_context>

<pallas_src>
import functools

import jax
import jax.numpy as jnp
from jax.experimental import pallas as pl
from jax.experimental.pallas import tpu as pltpu

# Inputs smaller than this (bytes of x) skip the Pallas kernel: a single fused
# XLA broadcast-multiply is already at roofline for one tile's worth of data.
_PALLAS_MIN_BYTES = 1 << 20

# Budget for one x block (bytes).  Double-buffered (x + out + scale) lands
# around ~20 MiB of VMEM: ample headroom on v7x (64 MiB/TC) and v5e/v6e (128).
_TILE_BUDGET_BYTES = 4 << 20

# Never request more scoped VMEM than this (leave compiler headroom on v7x).
_VMEM_CAP_BYTES = 48 << 20


def _scale_kernel(x_ref, scale_ref, o_ref):
    """out = x * scale  (scale is a per-row f32 column, broadcast over lanes)."""
    o_ref[...] = (x_ref[...] * scale_ref[...]).astype(o_ref.dtype)


def _round_up(v, m):
    return ((v + m - 1) // m) * m


def _sublane(itemsize):
    # dtype-aware sublane packing: 8 rows (f32), 16 (bf16/f16), 32 (int8/fp8).
    return {4: 8, 2: 16, 1: 32}.get(itemsize, 8)


def _scale_rows_pallas(x, scale):
    """Pallas streaming multiply: x[N, F] * scale[N, 1] -> [N, F] in x.dtype."""
    N, F = x.shape
    itemsize = jnp.dtype(x.dtype).itemsize
    sub = _sublane(itemsize)

    # Feature tiling: lane-dense 128-multiples when possible, otherwise a
    # full-F block (block last dim must be a 128-multiple or the full dim).
    if F % 128 == 0:
        tile_f = min(F, 2048)
    else:
        tile_f = F

    # Row tiling: as many rows as fit the per-tile budget, rounded to the
    # dtype's sublane packing, capped at 2048 and at the rounded-up row count.
    budget_elems = _TILE_BUDGET_BYTES // itemsize
    tile_n = (budget_elems // max(tile_f, 1)) // sub * sub
    tile_n = max(sub, min(2048, tile_n))
    tile_n = min(tile_n, _round_up(N, sub))

    # Very wide, non-128-aligned F can't be lane-tiled; if even the minimal
    # tile would blow the VMEM cap, fall back to a plain XLA multiply.
    if 4 * (sub * tile_f * itemsize) > _VMEM_CAP_BYTES:
        return (x * scale).astype(x.dtype)

    tile_bytes = tile_n * tile_f * itemsize
    vmem_limit = int(min(max(2 * (2 * tile_bytes + tile_n * 4) + (4 << 20),
                             16 << 20),
                         _VMEM_CAP_BYTES))

    grid = (pl.cdiv(N, tile_n), pl.cdiv(F, tile_f))
    return pl.pallas_call(
        _scale_kernel,
        out_shape=jax.ShapeDtypeStruct((N, F), x.dtype),
        grid_spec=pltpu.PrefetchScalarGridSpec(
            num_scalar_prefetch=0,
            grid=grid,
            in_specs=[
                pl.BlockSpec((tile_n, tile_f), lambda i, j: (i, j)),
                pl.BlockSpec((tile_n, 1), lambda i, j: (i, 0)),
            ],
            out_specs=pl.BlockSpec((tile_n, tile_f), lambda i, j: (i, j)),
        ),
        compiler_params=pltpu.CompilerParams(
            dimension_semantics=("parallel", "parallel"),
            vmem_limit_bytes=vmem_limit),
    )(x, scale)


@functools.partial(jax.jit, static_argnames=("batch_size", "use_pallas"))
def _graph_size_norm_impl(x, batch, batch_size, use_pallas):
    N = x.shape[0]
    if batch is None:
        # Single graph: every node scaled by N ** -0.5.
        scale = jnp.full((N, 1), float(N) ** -0.5, dtype=jnp.float32)
    else:
        b = batch.astype(jnp.int32)
        # Precondition: batch_size >= max(batch) + 1 (OOB indices would be
        # silently dropped by the scatter / clamped by the gather).
        deg = jnp.zeros((batch_size,), jnp.float32).at[b].add(1.0)
        deg = jnp.maximum(deg, 1.0)          # empty graphs: avoid inf (never gathered)
        scale = (deg ** -0.5)[b].reshape(N, 1)   # matches torch's pow(-0.5)
    if use_pallas:
        return _scale_rows_pallas(x, scale)
    return (x * scale).astype(x.dtype)


def graph_size_norm(x, batch=None, batch_size=None, *, force_pallas=False):
    """JAX/Pallas equivalent of torch_geometric GraphSizeNorm.forward."""
    N, F = x.shape
    if batch is not None and batch_size is None:
        # One host sync to resolve B; pass batch_size explicitly in hot loops
        # to avoid stalling the async dispatch pipeline on every call.
        batch_size = int(jax.device_get(jnp.max(batch))) + 1
    use_pallas = bool(force_pallas or
                      N * F * jnp.dtype(x.dtype).itemsize >= _PALLAS_MIN_BYTES)
    bsz = int(batch_size) if batch_size is not None else None
    return _graph_size_norm_impl(x, batch, bsz, use_pallas)


if __name__ == "__main__":
    key = jax.random.PRNGKey(0)
    kx, kb = jax.random.split(key)

    N, F, B = 64, 32, 3
    x = jax.random.normal(kx, (N, F), dtype=jnp.float32)
    batch = jnp.sort(jax.random.randint(kb, (N,), 0, B, dtype=jnp.int32))

    # force_pallas=True so the demo exercises the Pallas path at small shapes.
    out = jax.block_until_ready(
        graph_size_norm(x, batch, batch_size=B, force_pallas=True))

    # reference check (plain JAX)
    deg = jnp.zeros((B,), jnp.float32).at[batch].add(1.0)
    ref = x * (deg[batch] ** -0.5)[:, None]
    assert out.shape == x.shape and out.dtype == x.dtype
    assert jnp.allclose(out, ref, atol=1e-6, rtol=1e-6)

    # batch=None path (single graph): x / sqrt(N)
    out1 = jax.block_until_ready(graph_size_norm(x, force_pallas=True))
    assert jnp.allclose(out1, x / jnp.sqrt(float(N)), atol=1e-6, rtol=1e-6)

    # bf16 path: scale stays f32, output stays bf16
    xb = x.astype(jnp.bfloat16)
    outb = jax.block_until_ready(
        graph_size_norm(xb, batch, batch_size=B, force_pallas=True))
    assert outb.dtype == jnp.bfloat16
    assert jnp.allclose(outb.astype(jnp.float32), ref, atol=2e-2, rtol=2e-2)

    print("KERNEL_OK")
</pallas_src>

<mosaic_0001>
module attributes {stable_mosaic.version = 11 : i64} {
  func.func private @main(%arg0: i32) attributes {dimension_semantics = [#tpu.dimension_semantics<core_parallel>], iteration_bounds = array<i64: 2>, tpu.core_type = #tpu.core_type<sc_scalar_subcore>, window_params = []} {
    return
  }
}

module attributes {stable_mosaic.version = 11 : i64} {
  func.func private @main(%arg0: i32) attributes {dimension_semantics = [#tpu.dimension_semantics<core_parallel>], iteration_bounds = array<i64: 2>, tpu.core_type = #tpu.core_type<sc_scalar_subcore>, window_params = []} {
    return
  }
}

module attributes {stable_mosaic.version = 11 : i64} {
  func.func @_scale_kernel(%arg0: i32, %arg1: i32, %arg2: memref<64x32xf32, #tpu.memory_space<vmem>>, %arg3: memref<64x1xf32, #tpu.memory_space<vmem>>, %arg4: memref<64x32xf32, #tpu.memory_space<vmem>>) attributes {dimension_semantics = [#tpu.dimension_semantics<parallel>, #tpu.dimension_semantics<parallel>], iteration_bounds = array<i64: 1, 1>, scalar_prefetch = 0 : i64, scratch_operands = 0 : i64, tpu.core_type = #tpu.core_type<tc>, window_params = [{transform_indices = @transform_0, window_bounds = array<i64: 64, 32>}, {transform_indices = @transform_1, window_bounds = array<i64: 64, 1>}, {transform_indices = @transform_2, window_bounds = array<i64: 64, 32>}]} {
    %c0 = arith.constant 0 : index
    %c0_0 = arith.constant 0 : index
    %0 = vector.load %arg2[%c0, %c0_0] : memref<64x32xf32, #tpu.memory_space<vmem>>, vector<64x32xf32>
    %c0_1 = arith.constant 0 : index
    %c0_2 = arith.constant 0 : index
    %1 = vector.load %arg3[%c0_1, %c0_2] : memref<64x1xf32, #tpu.memory_space<vmem>>, vector<64x1xf32>
    %2 = vector.broadcast %1 : vector<64x1xf32> to vector<64x32xf32>
    %3 = arith.mulf %0, %2 : vector<64x32xf32>
    %c0_3 = arith.constant 0 : index
    %c0_4 = arith.constant 0 : index
    %4 = vector.load %arg4[%c0_3, %c0_4] : memref<64x32xf32, #tpu.memory_space<vmem>>, vector<64x32xf32>
    tpu.vector_store %arg4[%c0_3, %c0_4], %3 {strides = array<i32>} : memref<64x32xf32, #tpu.memory_space<vmem>>, vector<64x32xf32>,
    return
  }
  func.func @transform_0(%arg0: i32, %arg1: i32) -> (i32, i32) {
    %c0_i32 = arith.constant 0 : i32
    return %arg0, %arg1 : i32, i32
  }
  func.func @transform_1(%arg0: i32, %arg1: i32) -> (i32, i32) {
    %c0_i32 = arith.constant 0 : i32
    %c0_i32_0 = arith.constant 0 : i32
    return %arg0, %c0_i32 : i32, i32
  }
  func.func @transform_2(%arg0: i32, %arg1: i32) -> (i32, i32) {
    %c0_i32 = arith.constant 0 : i32
    return %arg0, %arg1 : i32, i32
  }
}

</mosaic_0001>

<llo_original>
// kernel: _graph_size_norm_impl.1
$region0: #{_graph_size_norm_impl.1}
  #allocation0 [shape = 'u32[]', space=smem, size = 0x4, offset = 0x4, fixed_abs, tag = 'smem constant byte address 0x4 - core index']
  #allocation1 [shape = 'u32[144,128]{1,0:T(1,128)}', space=vmem, size = 0x12000, scoped, tag = 'internal scratch']
  %s0 = inlined_call_operand.vmem [shape: f32[64,32], index: 0, kind: input, shape index: {}]
  %s1 = inlined_call_operand.vmem [shape: f32[64,1], index: 1, kind: input, shape index: {}]
  %s2 = inlined_call_operand.vmem [shape: f32[64,32], index: 2, kind: output, shape index: {}]
  %s3 = sld [smem:[#allocation0]]
  $region18: #{_graph_size_norm_impl.1} parent=0
    _
  %s5 = ssub.s32 1, %s3
  %s6 = scalar_select 0, %s5, %s3
  // Predicated region
  $region2: #{_graph_size_norm_impl.1} parent=0 // pred_check
    _
  $region3: #{_graph_size_norm_impl.1} parent=0 // pred_check_branch
    %8 = sbr.rel (0) target = $region5
  $region4: #{_graph_size_norm_impl.1} parent=0 // pred_region
    _
  $region5: #{_graph_size_norm_impl.1} parent=0 // pred_fallthru
    _
  // Predicated region
  $region6: #{_graph_size_norm_impl.1} parent=0 // pred_check
    _
  $region7: #{_graph_size_norm_impl.1} parent=0 // pred_check_branch
    %10 = sbr.rel (0) target = $region9
  $region8: #{_graph_size_norm_impl.1} parent=0 // pred_region
    _
  $region9: #{_graph_size_norm_impl.1} parent=0 // pred_fallthru
    _
  %v11 = vld [vmem:[%s0] sm:$0xff]
  %v12 = vld [vmem:[%s0 + $0x8] sm:$0xff]
  %v13 = vld [vmem:[%s0 + $0x10] sm:$0xff]
  %v14 = vld [vmem:[%s0 + $0x18] sm:$0xff]
  %v15 = vld [vmem:[%s0 + $0x20] sm:$0xff]
  %v16 = vld [vmem:[%s0 + $0x28] sm:$0xff]
  %v17 = vld [vmem:[%s0 + $0x30] sm:$0xff]
  %v18 = vld [vmem:[%s0 + $0x38] sm:$0xff]
  %v19 = vld [vmem:[%s1] sm:$0xff]
  %v20 = vld [vmem:[%s1 + $0x8] sm:$0xff]
  %v21 = vld [vmem:[%s1 + $0x10] sm:$0xff]
  %v22 = vld [vmem:[%s1 + $0x18] sm:$0xff]
  %v23 = vld [vmem:[%s1 + $0x20] sm:$0xff]
  %v24 = vld [vmem:[%s1 + $0x28] sm:$0xff]
  %v25 = vld [vmem:[%s1 + $0x30] sm:$0xff]
  %v26 = vld [vmem:[%s1 + $0x38] sm:$0xff]
  %28 = vset.pattern.permute.xlu0 0
  %29 = vperm.xlu0 %28, %v19
  %v30 = vpop.permute.xlu0 %29
  %33 = vset.pattern.permute.xlu0 0
  %34 = vperm.xlu0 %33, %v20
  %v35 = vpop.permute.xlu0 %34
  %38 = vset.pattern.permute.xlu0 0
  %39 = vperm.xlu0 %38, %v21
  %v40 = vpop.permute.xlu0 %39
  %43 = vset.pattern.permute.xlu0 0
  %44 = vperm.xlu0 %43, %v22
  %v45 = vpop.permute.xlu0 %44
  %48 = vset.pattern.permute.xlu0 0
  %49 = vperm.xlu0 %48, %v23
  %v50 = vpop.permute.xlu0 %49
  %53 = vset.pattern.permute.xlu0 0
  %54 = vperm.xlu0 %53, %v24
  %v55 = vpop.permute.xlu0 %54
  %58 = vset.pattern.permute.xlu0 0
  %59 = vperm.xlu0 %58, %v25
  %v60 = vpop.permute.xlu0 %59
  %63 = vset.pattern.permute.xlu0 0
  %64 = vperm.xlu0 %63, %v26
  %v65 = vpop.permute.xlu0 %64
  %v67 = vmul.f32 %v11, %v30
  %v68 = vmul.f32 %v12, %v35
  %v69 = vmul.f32 %v13, %v40
  %v70 = vmul.f32 %v14, %v45
  %v71 = vmul.f32 %v15, %v50
  %v72 = vmul.f32 %v16, %v55
  %v73 = vmul.f32 %v17, %v60
  %v74 = vmul.f32 %v18, %v65
  %vm75 = vcmask 261120
  %76 = vst.msk [vmem:[%s2] sm:$0xff] %vm75, %v67
  %77 = vst.msk [vmem:[%s2 + $0x8] sm:$0xff] %vm75, %v68
  %78 = vst.msk [vmem:[%s2 + $0x10] sm:$0xff] %vm75, %v69
  %79 = vst.msk [vmem:[%s2 + $0x18] sm:$0xff] %vm75, %v70
  %80 = vst.msk [vmem:[%s2 + $0x20] sm:$0xff] %vm75, %v71
  %81 = vst.msk [vmem:[%s2 + $0x28] sm:$0xff] %vm75, %v72
  %82 = vst.msk [vmem:[%s2 + $0x30] sm:$0xff] %vm75, %v73
  %83 = vst.msk [vmem:[%s2 + $0x38] sm:$0xff] %vm75, %v74
  // Predicated region
  $region10: #{_graph_size_norm_impl.1} parent=0 // pred_check
    _
  $region11: #{_graph_size_norm_impl.1} parent=0 // pred_check_branch
    %85 = sbr.rel (0) target = $region13
  $region12: #{_graph_size_norm_impl.1} parent=0 // pred_region
    _
  $region13: #{_graph_size_norm_impl.1} parent=0 // pred_fallthru
    _
  // Predicated region
  $region14: #{_graph_size_norm_impl.1} parent=0 // pred_check
    _
  $region15: #{_graph_size_norm_impl.1} parent=0 // pred_check_branch
    %87 = sbr.rel (0) target = $region17
  $region16: #{_graph_size_norm_impl.1} parent=0 // pred_region
    _
  $region17: #{_graph_size_norm_impl.1} parent=0 // pred_fallthru
    _

</llo_original>
